<compile_context>
chip_gen: v5e
topology: v5e:2x2
jax: 0.10.0
libtpu: 0.0.40
codegen_flags: <defaults>
</compile_context>

<pallas_src>
import math
import functools

import jax
import jax.numpy as jnp
from jax.experimental import pallas as pl
from jax.experimental.pallas import tpu as pltpu

OUT_PAD = 128  # lane-dense padded width for the 2-class classifier output


# ----------------------------- fused Pallas kernel ---------------------------

def gcnii_fused_kernel(
    x_ref,      # (B*N, D)       flattened node features
    a_ref,      # (B*N, B*N)     block-diagonal adjacency, pre-scaled by (1 - alpha)
    w_ref,      # (L+3, D, D)    [fc0_w, conv'_0..conv'_{L-1}, fc1_w, cls_w1]
    w2_ref,     # (D, OUT_PAD)   classifier head, zero-padded to 128 lanes
    b_ref,      # (8, OUT_PAD)   rows: fc0_b, fc1_b, ln_g, ln_b, cls_b1, prelu, cls_b2
    o_ref,      # (B*N, OUT_PAD)
    *, n_conv, d, alpha, eps):
    x = x_ref[...]                     # (BN, D) original features (residual for LN stage)
    A = a_ref[...]                     # (BN, BN)

    fc0_b  = b_ref[0:1, :d]
    fc1_b  = b_ref[1:2, :d]
    ln_g   = b_ref[2:3, :d]
    ln_b   = b_ref[3:4, :d]
    cls_b1 = b_ref[4:5, :d]
    prelu  = b_ref[5:6, :d]
    cls_b2 = b_ref[6:7, :]

    # fcs[0] + relu
    h = jnp.dot(x, w_ref[0], preferred_element_type=jnp.float32) + fc0_b
    h = jnp.maximum(h, 0.0)
    alpha_h0 = alpha * h               # initial-residual term, hoisted out of the loop

    # GraphConv stack (variant=False, residual=False), statically unrolled.
    # theta folded into W'_l; (1-alpha) folded into A'.
    for l in range(n_conv):
        support = jnp.dot(A, h, preferred_element_type=jnp.float32) + alpha_h0
        h = jnp.maximum(
            jnp.dot(support, w_ref[1 + l], preferred_element_type=jnp.float32), 0.0)

    # fcs[-1] + residual add of x_loc + LayerNorm over features
    y = jnp.dot(h, w_ref[1 + n_conv], preferred_element_type=jnp.float32) + fc1_b + x
    mu = jnp.mean(y, axis=-1, keepdims=True)
    var = jnp.mean((y - mu) ** 2, axis=-1, keepdims=True)
    y = (y - mu) * jax.lax.rsqrt(var + eps) * ln_g + ln_b

    # classifier: Linear -> PReLU(D) -> Linear(D, 2) (padded to OUT_PAD lanes)
    hc = jnp.dot(y, w_ref[2 + n_conv], preferred_element_type=jnp.float32) + cls_b1
    hc = jnp.where(hc >= 0.0, hc, prelu * hc)
    o_ref[...] = jnp.dot(hc, w2_ref[...], preferred_element_type=jnp.float32) + cls_b2


# --------------------------------- wrapper -----------------------------------

def gcnii_forward(x, A, params, lamda, alpha, eps=1e-5):
    B, N, D = x.shape
    conv_ws = params["conv_ws"]
    L = len(conv_ws)

    # dims[0] must equal dims[-1] for the `layer_inner += x_loc` residual.
    assert params["fc0_w"].shape == (D, D), "dims[0] must equal dims[-1]"
    assert params["fc1_w"].shape == (D, D)

    # Fold theta into the conv weights:  W'_l = theta_l * W_l + (1 - theta_l) * I.
    eye = jnp.eye(D, dtype=jnp.float32)
    conv_wp = []
    for i, w in enumerate(conv_ws):
        theta = math.log(lamda / (i + 1) + 1.0)
        conv_wp.append(theta * w + (1.0 - theta) * eye)

    # Single stacked weight slab: fc0, conv'_0..L-1, fc1, cls_w1  -> (L+3, D, D).
    w_stack = jnp.stack([params["fc0_w"]] + conv_wp
                        + [params["fc1_w"], params["cls_w1"]], axis=0)

    # Classifier head padded to lane-dense OUT_PAD output columns.
    C = params["cls_w2"].shape[1]
    w2p = jnp.zeros((D, OUT_PAD), jnp.float32).at[:, :C].set(params["cls_w2"])

    # Bias / per-channel-vector slab (8, OUT_PAD): one row per small vector.
    bias = jnp.zeros((8, OUT_PAD), jnp.float32)
    bias = bias.at[0, :D].set(params["fc0_b"].reshape(-1))
    bias = bias.at[1, :D].set(params["fc1_b"].reshape(-1))
    bias = bias.at[2, :D].set(params["ln_g"].reshape(-1))
    bias = bias.at[3, :D].set(params["ln_b"].reshape(-1))
    bias = bias.at[4, :D].set(params["cls_b1"].reshape(-1))
    bias = bias.at[5, :D].set(jnp.broadcast_to(params["prelu_w"].reshape(-1), (D,)))
    bias = bias.at[6, :C].set(params["cls_b2"].reshape(-1))

    # Flatten batch into the sublane axis; block-diagonal adjacency pre-scaled
    # by (1 - alpha) so batched bmm(A, h) becomes one dense matmul.
    BN = B * N
    xf = x.reshape(BN, D)
    Ab = jnp.zeros((BN, BN), jnp.float32)
    for b in range(B):
        Ab = Ab.at[b * N:(b + 1) * N, b * N:(b + 1) * N].set(A[b])
    Ab = (1.0 - alpha) * Ab

    kern = functools.partial(gcnii_fused_kernel, n_conv=L, d=D,
                             alpha=float(alpha), eps=float(eps))

    flops = (2 * BN * D * D            # fc0
             + L * (2 * BN * BN * D + 2 * BN * D * D)   # conv stack
             + 2 * BN * D * D          # fc1
             + 2 * BN * D * D          # cls linear 1
             + 2 * BN * D * OUT_PAD)   # cls head
    bytes_accessed = 4 * (xf.size + Ab.size + w_stack.size + w2p.size
                          + bias.size + BN * OUT_PAD)

    vmem = lambda: pl.BlockSpec(memory_space=pltpu.MemorySpace.VMEM)

    out = pl.pallas_call(
        kern,
        out_shape=jax.ShapeDtypeStruct((BN, OUT_PAD), jnp.float32),
        in_specs=[vmem(), vmem(), vmem(), vmem(), vmem()],
        out_specs=vmem(),
        cost_estimate=pl.CostEstimate(flops=int(flops), transcendentals=0,
                                      bytes_accessed=int(bytes_accessed)),
    )(xf, Ab, w_stack, w2p, bias)

    return out[:, :C]              # (B*N, 2)


# ---------------------------------- main --------------------------------------

if __name__ == "__main__":
    B, N, D = 2, 8, 32
    dims = [D, D, D]          # 2 GraphConv layers, all hidden dims equal
    lamda, alpha = 0.5, 0.1

    key = jax.random.PRNGKey(0)
    keys = jax.random.split(key, 12)

    def xavier(k, fan_in, fan_out):
        bound = math.sqrt(6.0 / (fan_in + fan_out))
        return jax.random.uniform(k, (fan_in, fan_out), jnp.float32, -bound, bound)

    params = {
        "fc0_w": xavier(keys[0], dims[0], dims[-1]),
        "fc0_b": jax.random.normal(keys[1], (1, dims[-1]), jnp.float32) * 0.02,
        "conv_ws": [xavier(keys[2], dims[0], dims[1]),
                    xavier(keys[3], dims[1], dims[2])],
        "fc1_w": xavier(keys[4], dims[-1], dims[-1]),
        "fc1_b": jax.random.normal(keys[5], (1, dims[-1]), jnp.float32) * 0.02,
        "ln_g": jnp.ones((1, dims[-1]), jnp.float32),
        "ln_b": jnp.zeros((1, dims[-1]), jnp.float32),
        "cls_w1": xavier(keys[6], dims[-1], dims[-1]),
        "cls_b1": jax.random.normal(keys[7], (1, dims[-1]), jnp.float32) * 0.02,
        # nn.PReLU(dims[-1]) -> per-channel slopes, PyTorch default init 0.25
        "prelu_w": jnp.full((1, dims[-1]), 0.25, jnp.float32),
        "cls_w2": xavier(keys[8], dims[-1], 2),
        "cls_b2": jax.random.normal(keys[9], (1, 2), jnp.float32) * 0.02,
    }

    # inputs: node features + row-normalized dense adjacency
    x = jax.random.normal(keys[10], (B, N, D), jnp.float32)
    A_raw = jax.random.uniform(keys[11], (B, N, N), jnp.float32)
    A = A_raw / jnp.sum(A_raw, axis=-1, keepdims=True)

    pred = gcnii_forward(x, A, params, lamda, alpha)
    jax.block_until_ready(pred)
    assert pred.shape == (B * N, 2), pred.shape
    print("KERNEL_OK")
</pallas_src>

<mosaic_0001>
module attributes {stable_mosaic.version = 11 : i64} {
  func.func @gcnii_fused_kernel(%arg0: memref<16x32xf32, #tpu.memory_space<vmem>>, %arg1: memref<16x16xf32, #tpu.memory_space<vmem>>, %arg2: memref<5x32x32xf32, #tpu.memory_space<vmem>>, %arg3: memref<32x128xf32, #tpu.memory_space<vmem>>, %arg4: memref<8x128xf32, #tpu.memory_space<vmem>>, %arg5: memref<16x128xf32, #tpu.memory_space<vmem>>) attributes {dimension_semantics = [], scalar_prefetch = 0 : i64, scratch_operands = 0 : i64, tpu.core_type = #tpu.core_type<tc>} {
    %c0 = arith.constant 0 : index
    %c0_0 = arith.constant 0 : index
    %0 = vector.load %arg0[%c0, %c0_0] : memref<16x32xf32, #tpu.memory_space<vmem>>, vector<16x32xf32>
    %c0_1 = arith.constant 0 : index
    %c0_2 = arith.constant 0 : index
    %1 = vector.load %arg1[%c0_1, %c0_2] : memref<16x16xf32, #tpu.memory_space<vmem>>, vector<16x16xf32>
    %c0_3 = arith.constant 0 : index
    %c0_4 = arith.constant 0 : index
    %2 = vector.load %arg4[%c0_3, %c0_4] : memref<8x128xf32, #tpu.memory_space<vmem>>, vector<1x32xf32>
    %c1 = arith.constant 1 : index
    %c0_5 = arith.constant 0 : index
    %3 = vector.load %arg4[%c1, %c0_5] : memref<8x128xf32, #tpu.memory_space<vmem>>, vector<1x32xf32>
    %c2 = arith.constant 2 : index
    %c0_6 = arith.constant 0 : index
    %4 = vector.load %arg4[%c2, %c0_6] : memref<8x128xf32, #tpu.memory_space<vmem>>, vector<1x32xf32>
    %c3 = arith.constant 3 : index
    %c0_7 = arith.constant 0 : index
    %5 = vector.load %arg4[%c3, %c0_7] : memref<8x128xf32, #tpu.memory_space<vmem>>, vector<1x32xf32>
    %c4 = arith.constant 4 : index
    %c0_8 = arith.constant 0 : index
    %6 = vector.load %arg4[%c4, %c0_8] : memref<8x128xf32, #tpu.memory_space<vmem>>, vector<1x32xf32>
    %c5 = arith.constant 5 : index
    %c0_9 = arith.constant 0 : index
    %7 = vector.load %arg4[%c5, %c0_9] : memref<8x128xf32, #tpu.memory_space<vmem>>, vector<1x32xf32>
    %c6 = arith.constant 6 : index
    %c0_10 = arith.constant 0 : index
    %8 = vector.load %arg4[%c6, %c0_10] : memref<8x128xf32, #tpu.memory_space<vmem>>, vector<1x128xf32>
    %c0_11 = arith.constant 0 : index
    %c0_12 = arith.constant 0 : index
    %c0_13 = arith.constant 0 : index
    %9 = vector.load %arg2[%c0_11, %c0_12, %c0_13] : memref<5x32x32xf32, #tpu.memory_space<vmem>>, vector<1x32x32xf32>
    %10 = vector.shape_cast %9 : vector<1x32x32xf32> to vector<32x32xf32>
    %cst = arith.constant dense<0.000000e+00> : vector<16x32xf32>
    %11 = tpu.matmul %0, %10, %cst {dimension_numbers = #tpu.dot_dimension_numbers<[1], [0], [0], [1], [0, 0, 1, 1], [], []>} : vector<16x32xf32>, vector<32x32xf32>, vector<16x32xf32> -> vector<16x32xf32>
    %12 = vector.broadcast %2 : vector<1x32xf32> to vector<16x32xf32>
    %13 = arith.addf %11, %12 : vector<16x32xf32>
    %cst_14 = arith.constant 0.000000e+00 : f32
    %14 = vector.broadcast %cst_14 : f32 to vector<16x32xf32>
    %15 = arith.maximumf %13, %14 : vector<16x32xf32>
    %cst_15 = arith.constant 1.000000e-01 : f32
    %16 = vector.broadcast %cst_15 : f32 to vector<16x32xf32>
    %17 = arith.mulf %16, %15 : vector<16x32xf32>
    %cst_16 = arith.constant dense<0.000000e+00> : vector<16x32xf32>
    %18 = tpu.matmul %1, %15, %cst_16 {dimension_numbers = #tpu.dot_dimension_numbers<[1], [0], [0], [1], [0, 0, 1, 1], [], []>} : vector<16x16xf32>, vector<16x32xf32>, vector<16x32xf32> -> vector<16x32xf32>
    %19 = arith.addf %18, %17 : vector<16x32xf32>
    %c1_17 = arith.constant 1 : index
    %c0_18 = arith.constant 0 : index
    %c0_19 = arith.constant 0 : index
    %20 = vector.load %arg2[%c1_17, %c0_18, %c0_19] : memref<5x32x32xf32, #tpu.memory_space<vmem>>, vector<1x32x32xf32>
    %21 = vector.shape_cast %20 : vector<1x32x32xf32> to vector<32x32xf32>
    %cst_20 = arith.constant dense<0.000000e+00> : vector<16x32xf32>
    %22 = tpu.matmul %19, %21, %cst_20 {dimension_numbers = #tpu.dot_dimension_numbers<[1], [0], [0], [1], [0, 0, 1, 1], [], []>} : vector<16x32xf32>, vector<32x32xf32>, vector<16x32xf32> -> vector<16x32xf32>
    %cst_21 = arith.constant 0.000000e+00 : f32
    %23 = vector.broadcast %cst_21 : f32 to vector<16x32xf32>
    %24 = arith.maximumf %22, %23 : vector<16x32xf32>
    %cst_22 = arith.constant dense<0.000000e+00> : vector<16x32xf32>
    %25 = tpu.matmul %1, %24, %cst_22 {dimension_numbers = #tpu.dot_dimension_numbers<[1], [0], [0], [1], [0, 0, 1, 1], [], []>} : vector<16x16xf32>, vector<16x32xf32>, vector<16x32xf32> -> vector<16x32xf32>
    %26 = arith.addf %25, %17 : vector<16x32xf32>
    %c2_23 = arith.constant 2 : index
    %c0_24 = arith.constant 0 : index
    %c0_25 = arith.constant 0 : index
    %27 = vector.load %arg2[%c2_23, %c0_24, %c0_25] : memref<5x32x32xf32, #tpu.memory_space<vmem>>, vector<1x32x32xf32>
    %28 = vector.shape_cast %27 : vector<1x32x32xf32> to vector<32x32xf32>
    %cst_26 = arith.constant dense<0.000000e+00> : vector<16x32xf32>
    %29 = tpu.matmul %26, %28, %cst_26 {dimension_numbers = #tpu.dot_dimension_numbers<[1], [0], [0], [1], [0, 0, 1, 1], [], []>} : vector<16x32xf32>, vector<32x32xf32>, vector<16x32xf32> -> vector<16x32xf32>
    %cst_27 = arith.constant 0.000000e+00 : f32
    %30 = vector.broadcast %cst_27 : f32 to vector<16x32xf32>
    %31 = arith.maximumf %29, %30 : vector<16x32xf32>
    %c3_28 = arith.constant 3 : index
    %c0_29 = arith.constant 0 : index
    %c0_30 = arith.constant 0 : index
    %32 = vector.load %arg2[%c3_28, %c0_29, %c0_30] : memref<5x32x32xf32, #tpu.memory_space<vmem>>, vector<1x32x32xf32>
    %33 = vector.shape_cast %32 : vector<1x32x32xf32> to vector<32x32xf32>
    %cst_31 = arith.constant dense<0.000000e+00> : vector<16x32xf32>
    %34 = tpu.matmul %31, %33, %cst_31 {dimension_numbers = #tpu.dot_dimension_numbers<[1], [0], [0], [1], [0, 0, 1, 1], [], []>} : vector<16x32xf32>, vector<32x32xf32>, vector<16x32xf32> -> vector<16x32xf32>
    %35 = vector.broadcast %3 : vector<1x32xf32> to vector<16x32xf32>
    %36 = arith.addf %34, %35 : vector<16x32xf32>
    %37 = arith.addf %36, %0 : vector<16x32xf32>
    %cst_32 = arith.constant dense<0.000000e+00> : vector<16xf32>
    %38 = vector.multi_reduction <add>, %37, %cst_32 [1] : vector<16x32xf32> to vector<16xf32>
    %39 = vector.shape_cast %38 : vector<16xf32> to vector<16x1xf32>
    %cst_33 = arith.constant 3.200000e+01 : f32
    %40 = vector.broadcast %cst_33 : f32 to vector<16x1xf32>
    %41 = arith.divf %39, %40 : vector<16x1xf32>
    %42 = vector.broadcast %41 : vector<16x1xf32> to vector<16x32xf32>
    %43 = arith.subf %37, %42 : vector<16x32xf32>
    %44 = arith.mulf %43, %43 : vector<16x32xf32>
    %cst_34 = arith.constant dense<0.000000e+00> : vector<16xf32>
    %45 = vector.multi_reduction <add>, %44, %cst_34 [1] : vector<16x32xf32> to vector<16xf32>
    %46 = vector.shape_cast %45 : vector<16xf32> to vector<16x1xf32>
    %cst_35 = arith.constant 3.200000e+01 : f32
    %47 = vector.broadcast %cst_35 : f32 to vector<16x1xf32>
    %48 = arith.divf %46, %47 : vector<16x1xf32>
    %49 = vector.broadcast %41 : vector<16x1xf32> to vector<16x32xf32>
    %50 = arith.subf %37, %49 : vector<16x32xf32>
    %cst_36 = arith.constant 9.99999974E-6 : f32
    %51 = vector.broadcast %cst_36 : f32 to vector<16x1xf32>
    %52 = arith.addf %48, %51 : vector<16x1xf32>
    %53 = math.rsqrt %52 : vector<16x1xf32>
    %54 = vector.broadcast %53 : vector<16x1xf32> to vector<16x32xf32>
    %55 = arith.mulf %50, %54 : vector<16x32xf32>
    %56 = vector.broadcast %4 : vector<1x32xf32> to vector<16x32xf32>
    %57 = arith.mulf %55, %56 : vector<16x32xf32>
    %58 = vector.broadcast %5 : vector<1x32xf32> to vector<16x32xf32>
    %59 = arith.addf %57, %58 : vector<16x32xf32>
    %c4_37 = arith.constant 4 : index
    %c0_38 = arith.constant 0 : index
    %c0_39 = arith.constant 0 : index
    %60 = vector.load %arg2[%c4_37, %c0_38, %c0_39] : memref<5x32x32xf32, #tpu.memory_space<vmem>>, vector<1x32x32xf32>
    %61 = vector.shape_cast %60 : vector<1x32x32xf32> to vector<32x32xf32>
    %cst_40 = arith.constant dense<0.000000e+00> : vector<16x32xf32>
    %62 = tpu.matmul %59, %61, %cst_40 {dimension_numbers = #tpu.dot_dimension_numbers<[1], [0], [0], [1], [0, 0, 1, 1], [], []>} : vector<16x32xf32>, vector<32x32xf32>, vector<16x32xf32> -> vector<16x32xf32>
    %63 = vector.broadcast %6 : vector<1x32xf32> to vector<16x32xf32>
    %64 = arith.addf %62, %63 : vector<16x32xf32>
    %cst_41 = arith.constant 0.000000e+00 : f32
    %65 = vector.broadcast %cst_41 : f32 to vector<16x32xf32>
    %66 = arith.cmpf oge, %64, %65 : vector<16x32xf32>
    %67 = vector.broadcast %7 : vector<1x32xf32> to vector<16x32xf32>
    %68 = arith.mulf %67, %64 : vector<16x32xf32>
    %69 = arith.select %66, %64, %68 : vector<16x32xi1>, vector<16x32xf32>
    %c0_42 = arith.constant 0 : index
    %c0_43 = arith.constant 0 : index
    %70 = vector.load %arg3[%c0_42, %c0_43] : memref<32x128xf32, #tpu.memory_space<vmem>>, vector<32x128xf32>
    %cst_44 = arith.constant dense<0.000000e+00> : vector<16x128xf32>
    %71 = tpu.matmul %69, %70, %cst_44 {dimension_numbers = #tpu.dot_dimension_numbers<[1], [0], [0], [1], [0, 0, 1, 1], [], []>} : vector<16x32xf32>, vector<32x128xf32>, vector<16x128xf32> -> vector<16x128xf32>
    %72 = vector.broadcast %8 : vector<1x128xf32> to vector<16x128xf32>
    %73 = arith.addf %71, %72 : vector<16x128xf32>
    %c0_45 = arith.constant 0 : index
    %c0_46 = arith.constant 0 : index
    %74 = vector.load %arg5[%c0_45, %c0_46] : memref<16x128xf32, #tpu.memory_space<vmem>>, vector<16x128xf32>
    tpu.vector_store %arg5[%c0_45, %c0_46], %73 {strides = array<i32>} : memref<16x128xf32, #tpu.memory_space<vmem>>, vector<16x128xf32>,
    return
  }
}

</mosaic_0001>

<llo_original>
// kernel: tpu_custom_call.1
$region0: #{tpu_custom_call.1}
  #allocation0 [shape = 'u32[]', space=smem, size = 0x4, offset = 0x4, fixed_abs, tag = 'smem constant byte address 0x4 - core index']
  #allocation1 [shape = 'u32[72,128]{1,0:T(1,128)}', space=vmem, size = 0x9000, scoped, tag = 'internal scratch']
  %s0 = inlined_call_operand.hbm [shape: f32[16,32], index: 0, kind: input, shape index: {}]
  %s1 = inlined_call_operand.hbm [shape: f32[16,16], index: 1, kind: input, shape index: {}]
  %s2 = inlined_call_operand.hbm [shape: f32[5,32,32], index: 2, kind: input, shape index: {}]
  %s3 = inlined_call_operand.hbm [shape: f32[32,128], index: 3, kind: input, shape index: {}]
  %s4 = inlined_call_operand.hbm [shape: f32[8,128], index: 4, kind: input, shape index: {}]
  %s5 = inlined_call_operand.hbm [shape: f32[16,128], index: 5, kind: output, shape index: {}]
  %s6 = sld [smem:[#allocation0]]
  $region50: #{tpu_custom_call.1} parent=0
    _
  %s8 = ssub.s32 1, %s6
  %s9 = scalar_select 0, %s8, %s6
  $region1: #{tpu_custom_call.1} parent=0
    #allocation2 [shape = 'u8[8192]{0}', space=vmem, size = 0x2000, scoped, tag = 'input window, operand 0, single buffered']
    #allocation3 [shape = 's32[1]{0}', space=sflag, size = 0x4, scoped, tag = 'scoped memory for tpu_custom_call.1']
    #allocation4 [shape = 's32[1]{0}', space=sflag, size = 0x4, scoped, tag = 'scoped memory for tpu_custom_call.1']
    #allocation5 [shape = 'u8[8192]{0}', space=vmem, size = 0x2000, scoped, tag = 'input window, operand 1, single buffered']
    #allocation6 [shape = 's32[1]{0}', space=sflag, size = 0x4, scoped, tag = 'scoped memory for tpu_custom_call.1']
    #allocation7 [shape = 'u8[81920]{0}', space=vmem, size = 0x14000, scoped, tag = 'input window, operand 2, single buffered']
    #allocation8 [shape = 'u8[16384]{0}', space=vmem, size = 0x4000, scoped, tag = 'input window, operand 3, single buffered']
    #allocation9 [shape = 's32[1]{0}', space=sflag, size = 0x4, scoped, tag = 'scoped memory for tpu_custom_call.1']
    #allocation10 [shape = 'u8[4096]{0}', space=vmem, size = 0x1000, scoped, tag = 'input window, operand 4, single buffered']
    #allocation11 [shape = 'u8[8192]{0}', space=vmem, size = 0x2000, scoped, tag = 'output window, operand 0, single buffered']
    %10 = vsyncpa [#allocation3], 0
    %11 = vsyncpa [#allocation6], 0
    %12 = vsyncpa [#allocation9], 0
    %13 = vsyncpa [#allocation4], 0
    // Predicated region
    $region2: #{tpu_custom_call.1} parent=1 // pred_check
      _
    $region3: #{tpu_custom_call.1} parent=1 // pred_check_branch
      %15 = sbr.rel (0) target = $region5
    $region4: #{tpu_custom_call.1} parent=1 // pred_region
      %17 = vsyncadd [#allocation3], 0
      %s18 = sshll.u32 %s0, 4
      %s19 = int_to_ptr.hbm [resolvable:$true] %s18
      %s20 = sshll.u32 [#allocation2], 4
      %s21 = int_to_ptr.vmem [resolvable:$true] %s20
      %26 = dma.hbm_to_vmem [thread:$0]  %s19, 256, %s21, [#allocation3], 128, 128, 8
    $region5: #{tpu_custom_call.1} parent=1 // pred_fallthru
      _
    // Predicated region
    $region6: #{tpu_custom_call.1} parent=1 // pred_check
      _
    $region7: #{tpu_custom_call.1} parent=1 // pred_check_branch
      %28 = sbr.rel (0) target = $region9
    $region8: #{tpu_custom_call.1} parent=1 // pred_region
      %30 = vsyncadd [#allocation6], 0
      %s31 = sshll.u32 %s1, 4
      %s32 = int_to_ptr.hbm [resolvable:$true] %s31
      %s33 = sshll.u32 [#allocation5], 4
      %s34 = int_to_ptr.vmem [resolvable:$true] %s33
      %39 = dma.hbm_to_vmem [thread:$0]  %s32, 256, %s34, [#allocation6], 128, 128, 8
    $region9: #{tpu_custom_call.1} parent=1 // pred_fallthru
      _
    // Predicated region
    $region10: #{tpu_custom_call.1} parent=1 // pred_check
      _
    $region11: #{tpu_custom_call.1} parent=1 // pred_check_branch
      %41 = sbr.rel (0) target = $region13
    $region12: #{tpu_custom_call.1} parent=1 // pred_region
      %43 = vsyncadd [#allocation6], 0
      %s44 = sshll.u32 %s2, 4
      %s45 = int_to_ptr.hbm [resolvable:$true] %s44
      %s46 = sshll.u32 [#allocation7], 4
      %s47 = int_to_ptr.vmem [resolvable:$true] %s46
      %52 = dma.hbm_to_vmem [thread:$0]  %s45, 2560, %s47, [#allocation6], 128, 128, 8
    $region13: #{tpu_custom_call.1} parent=1 // pred_fallthru
      _
    // Predicated region
    $region14: #{tpu_custom_call.1} parent=1 // pred_check
      _
    $region15: #{tpu_custom_call.1} parent=1 // pred_check_branch
      %54 = sbr.rel (0) target = $region17
    $region16: #{tpu_custom_call.1} parent=1 // pred_region
      %56 = vsyncadd [#allocation9], 0
      %s57 = sshll.u32 %s3, 4
      %s58 = int_to_ptr.hbm [resolvable:$true] %s57
      %s59 = sshll.u32 [#allocation8], 4
      %s60 = int_to_ptr.vmem [resolvable:$true] %s59
      %65 = dma.hbm_to_vmem [thread:$0]  %s58, 512, %s60, [#allocation9], 128, 128, 8
    $region17: #{tpu_custom_call.1} parent=1 // pred_fallthru
      _
    // Predicated region
    $region18: #{tpu_custom_call.1} parent=1 // pred_check
      _
    $region19: #{tpu_custom_call.1} parent=1 // pred_check_branch
      %67 = sbr.rel (0) target = $region21
    $region20: #{tpu_custom_call.1} parent=1 // pred_region
      %69 = vsyncadd [#allocation9], 0
      %s71 = sshll.u32 %s4, 4
      %s72 = int_to_ptr.hbm [resolvable:$true] %s71
      %s73 = sshll.u32 [#allocation10], 4
      %s74 = int_to_ptr.vmem [resolvable:$true] %s73
      %76 = dma.hbm_to_vmem [thread:$0]  %s72, 128, %s74, [#allocation9]
    $region21: #{tpu_custom_call.1} parent=1 // pred_fallthru
      _
    // Predicated region
    $region22: #{tpu_custom_call.1} parent=1 // pred_check
      _
    $region23: #{tpu_custom_call.1} parent=1 // pred_check_branch
      %78 = sbr.rel (0) target = $region25
    $region24: #{tpu_custom_call.1} parent=1 // pred_region
      %80 = dma.done [#allocation3], 256
    $region25: #{tpu_custom_call.1} parent=1 // pred_fallthru
      _
    // Predicated region
    $region26: #{tpu_custom_call.1} parent=1 // pred_check
      _
    $region27: #{tpu_custom_call.1} parent=1 // pred_check_branch
      %82 = sbr.rel (0) target = $region29
    $region28: #{tpu_custom_call.1} parent=1 // pred_region
      %84 = dma.done [#allocation6], 256
    $region29: #{tpu_custom_call.1} parent=1 // pred_fallthru
      _
    // Predicated region
    $region30: #{tpu_custom_call.1} parent=1 // pred_check
      _
    $region31: #{tpu_custom_call.1} parent=1 // pred_check_branch
      %86 = sbr.rel (0) target = $region33
    $region32: #{tpu_custom_call.1} parent=1 // pred_region
      %88 = dma.done [#allocation6], 2560
    $region33: #{tpu_custom_call.1} parent=1 // pred_fallthru
      _
    // Predicated region
    $region34: #{tpu_custom_call.1} parent=1 // pred_check
      _
    $region35: #{tpu_custom_call.1} parent=1 // pred_check_branch
      %90 = sbr.rel (0) target = $region37
    $region36: #{tpu_custom_call.1} parent=1 // pred_region
      %92 = dma.done [#allocation9], 512
    $region37: #{tpu_custom_call.1} parent=1 // pred_fallthru
      _
    // Predicated region
    $region38: #{tpu_custom_call.1} parent=1 // pred_check
      _
    $region39: #{tpu_custom_call.1} parent=1 // pred_check_branch
      %94 = sbr.rel (0) target = $region41
    $region40: #{tpu_custom_call.1} parent=1 // pred_region
      %96 = dma.done [#allocation9], 128
    $region41: #{tpu_custom_call.1} parent=1 // pred_fallthru
      _
    %v97 = vld [vmem:[#allocation2] sm:$0xff]
    %v98 = vld [vmem:[#allocation2 + $0x8] sm:$0xff]
    %v99 = vld [vmem:[#allocation5] sm:$0xff]
    %v100 = vld [vmem:[#allocation5 + $0x8] sm:$0xff]
    %v101 = vld [vmem:[#allocation10] sm:$0x1]
    %v102 = vld [vmem:[#allocation10 + $0x1] sm:$0x1]
    %v103 = vld [vmem:[#allocation10 + $0x2] sm:$0x1]
    %v104 = vld [vmem:[#allocation10 + $0x3] sm:$0x1]
    %v105 = vld [vmem:[#allocation10 + $0x4] sm:$0x1]
    %v106 = vld [vmem:[#allocation10 + $0x5] sm:$0x1]
    %v107 = vld [vmem:[#allocation10 + $0x6] sm:$0x1]
    %v108 = vld [vmem:[#allocation7] sm:$0xff]
    %v109 = vld [vmem:[#allocation7 + $0x8] sm:$0xff]
    %v110 = vld [vmem:[#allocation7 + $0x10] sm:$0xff]
    %v111 = vld [vmem:[#allocation7 + $0x18] sm:$0xff]
    %v112 = vperm.slane %v101, 0
    %vm113 = vcmask 261120
    %v115 = vsel %vm113, %v97, 0
    %v118 = vsel %vm113, %v98, 0
    %120 = vmatpush.msra.mxu0 0.0
    %121 = vmatpush.msra.mxu0 0.0
    %122 = vmatpush.msra.mxu0 0.0
    %123 = vmatpush.msra.mxu0 0.0
    %124 = vmatpush.msra.mxu0 0.0
    %125 = vmatpush.msra.mxu0 0.0
    %126 = vmatpush.msra.mxu0 0.0
    %127 = vmatpush.msra.mxu0 0.0
    %128 = vmatpush.msra.mxu0 0.0
    %129 = vmatpush.msra.mxu0 0.0
    %130 = vmatpush.msra.mxu0 0.0
    %131 = vmatpush.msra.mxu0 0.0
    %132 = vmatpush.msra.mxu0 %v111
    %133 = vmatpush.msra.mxu0 %v110
    %134 = vmatpush.msra.mxu0 %v109
    %135 = vmatpush.msra.mxu0 %v108
    %136 = vmatmul.f32.gmra.mxu0 %v115
    %v137 = vpop.f32.mrf.mxu0
    %v138 = vadd.f32 %v112, %v137
    %139 = vmatmul.f32.gmra.mxu0 %v118
    %v140 = vpop.f32.mrf.mxu0
    %v141 = vadd.f32 %v112, %v140
    %142 = vdwg.mxu0
    %v143 = vmax.f32 %v138, 0.0
    %v144 = vmax.f32 %v141, 0.0
    %v145 = vmul.f32 %v143, 0.1
    %v146 = vmul.f32 %v144, 0.1
    %vm147 = vcmask 130048
    %v149 = vsel %vm147, %v99, 0
    %v152 = vsel %vm147, %v100, 0
    %154 = vmatpush.msra.mxu0 0.0
    %155 = vmatpush.msra.mxu0 0.0
    %156 = vmatpush.msra.mxu0 0.0
    %157 = vmatpush.msra.mxu0 0.0
    %158 = vmatpush.msra.mxu0 0.0
    %159 = vmatpush.msra.mxu0 0.0
    %160 = vmatpush.msra.mxu0 0.0
    %161 = vmatpush.msra.mxu0 0.0
    %162 = vmatpush.msra.mxu0 0.0
    %163 = vmatpush.msra.mxu0 0.0
    %164 = vmatpush.msra.mxu0 0.0
    %165 = vmatpush.msra.mxu0 0.0
    %166 = vmatpush.msra.mxu0 0.0
    %167 = vmatpush.msra.mxu0 0.0
    %168 = vmatpush.msra.mxu0 %v144
    %169 = vmatpush.msra.mxu0 %v143
    %170 = vmatmul.f32.gmra.mxu0 %v149
    %v171 = vpop.f32.mrf.mxu0
    %v172 = vadd.f32 %v145, %v171
    %173 = vmatmul.f32.gmra.mxu0 %v152
    %v174 = vpop.f32.mrf.mxu0
    %v175 = vadd.f32 %v146, %v174
    %176 = vdwg.mxu0
    %s177 = scalar_lea.vmem [#allocation7], 32
    %v178 = vld [vmem:[%s177] sm:$0xff]
    %v179 = vld [vmem:[%s177 + $0x8] sm:$0xff]
    %v180 = vld [vmem:[%s177 + $0x10] sm:$0xff]
    %v181 = vld [vmem:[%s177 + $0x18] sm:$0xff]
    %v183 = vsel %vm113, %v172, 0
    %v186 = vsel %vm113, %v175, 0
    %188 = vmatpush.msra.mxu0 0.0
    %189 = vmatpush.msra.mxu0 0.0
    %190 = vmatpush.msra.mxu0 0.0
    %191 = vmatpush.msra.mxu0 0.0
    %192 = vmatpush.msra.mxu0 0.0
    %193 = vmatpush.msra.mxu0 0.0
    %194 = vmatpush.msra.mxu0 0.0
    %195 = vmatpush.msra.mxu0 0.0
    %196 = vmatpush.msra.mxu0 0.0
    %197 = vmatpush.msra.mxu0 0.0
    %198 = vmatpush.msra.mxu0 0.0
    %199 = vmatpush.msra.mxu0 0.0
    %200 = vmatpush.msra.mxu0 %v181
    %201 = vmatpush.msra.mxu0 %v180
    %202 = vmatpush.msra.mxu0 %v179
    %203 = vmatpush.msra.mxu0 %v178
    %204 = vmatmul.f32.gmra.mxu0 %v183
    %v205 = vpop.f32.mrf.mxu0
    %v206 = vadd.f32 0.0, %v205
    %207 = vmatmul.f32.gmra.mxu0 %v186
    %v208 = vpop.f32.mrf.mxu0
    %v209 = vadd.f32 0.0, %v208
    %210 = vdwg.mxu0
    %v211 = vmax.f32 %v206, 0.0
    %v212 = vmax.f32 %v209, 0.0
    %213 = vmatpush.msra.mxu0 0.0
    %214 = vmatpush.msra.mxu0 0.0
    %215 = vmatpush.msra.mxu0 0.0
    %216 = vmatpush.msra.mxu0 0.0
    %217 = vmatpush.msra.mxu0 0.0
    %218 = vmatpush.msra.mxu0 0.0
    %219 = vmatpush.msra.mxu0 0.0
    %220 = vmatpush.msra.mxu0 0.0
    %221 = vmatpush.msra.mxu0 0.0
    %222 = vmatpush.msra.mxu0 0.0
    %223 = vmatpush.msra.mxu0 0.0
    %224 = vmatpush.msra.mxu0 0.0
    %225 = vmatpush.msra.mxu0 0.0
    %226 = vmatpush.msra.mxu0 0.0
    %227 = vmatpush.msra.mxu0 %v212
    %228 = vmatpush.msra.mxu0 %v211
    %229 = vmatmul.f32.gmra.mxu0 %v149
    %v230 = vpop.f32.mrf.mxu0
    %v231 = vadd.f32 %v145, %v230
    %232 = vmatmul.f32.gmra.mxu0 %v152
    %v233 = vpop.f32.mrf.mxu0
    %v234 = vadd.f32 %v146, %v233
    %235 = vdwg.mxu0
    %s236 = scalar_lea.vmem [#allocation7], 64
    %v237 = vld [vmem:[%s236] sm:$0xff]
    %v238 = vld [vmem:[%s236 + $0x8] sm:$0xff]
    %v239 = vld [vmem:[%s236 + $0x10] sm:$0xff]
    %v240 = vld [vmem:[%s236 + $0x18] sm:$0xff]
    %v242 = vsel %vm113, %v231, 0
    %v245 = vsel %vm113, %v234, 0
    %247 = vmatpush.msra.mxu0 0.0
    %248 = vmatpush.msra.mxu0 0.0
    %249 = vmatpush.msra.mxu0 0.0
    %250 = vmatpush.msra.mxu0 0.0
    %251 = vmatpush.msra.mxu0 0.0
    %252 = vmatpush.msra.mxu0 0.0
    %253 = vmatpush.msra.mxu0 0.0
    %254 = vmatpush.msra.mxu0 0.0
    %255 = vmatpush.msra.mxu0 0.0
    %256 = vmatpush.msra.mxu0 0.0
    %257 = vmatpush.msra.mxu0 0.0
    %258 = vmatpush.msra.mxu0 0.0
    %259 = vmatpush.msra.mxu0 %v240
    %260 = vmatpush.msra.mxu0 %v239
    %261 = vmatpush.msra.mxu0 %v238
    %262 = vmatpush.msra.mxu0 %v237
    %263 = vmatmul.f32.gmra.mxu0 %v242
    %v264 = vpop.f32.mrf.mxu0
    %v265 = vadd.f32 0.0, %v264
    %266 = vmatmul.f32.gmra.mxu0 %v245
    %v267 = vpop.f32.mrf.mxu0
    %v268 = vadd.f32 0.0, %v267
    %269 = vdwg.mxu0
    %v270 = vmax.f32 %v265, 0.0
    %v271 = vmax.f32 %v268, 0.0
    %s272 = scalar_lea.vmem [#allocation7], 96
    %v273 = vld [vmem:[%s272] sm:$0xff]
    %v274 = vld [vmem:[%s272 + $0x8] sm:$0xff]
    %v275 = vld [vmem:[%s272 + $0x10] sm:$0xff]
    %v276 = vld [vmem:[%s272 + $0x18] sm:$0xff]
    %v277 = vperm.slane %v102, 0
    %v279 = vsel %vm113, %v270, 0
    %v282 = vsel %vm113, %v271, 0
    %284 = vmatpush.msra.mxu0 0.0
    %285 = vmatpush.msra.mxu0 0.0
    %286 = vmatpush.msra.mxu0 0.0
    %287 = vmatpush.msra.mxu0 0.0
    %288 = vmatpush.msra.mxu0 0.0
    %289 = vmatpush.msra.mxu0 0.0
    %290 = vmatpush.msra.mxu0 0.0
    %291 = vmatpush.msra.mxu0 0.0
    %292 = vmatpush.msra.mxu0 0.0
    %293 = vmatpush.msra.mxu0 0.0
    %294 = vmatpush.msra.mxu0 0.0
    %295 = vmatpush.msra.mxu0 0.0
    %296 = vmatpush.msra.mxu0 %v276
    %297 = vmatpush.msra.mxu0 %v275
    %298 = vmatpush.msra.mxu0 %v274
    %299 = vmatpush.msra.mxu0 %v273
    %300 = vmatmul.f32.gmra.mxu0 %v279
    %v301 = vpop.f32.mrf.mxu0
    %v302 = vadd.f32 %v277, %v301
    %303 = vmatmul.f32.gmra.mxu0 %v282
    %v304 = vpop.f32.mrf.mxu0
    %v305 = vadd.f32 %v277, %v304
    %306 = vdwg.mxu0
    %v307 = vadd.f32 %v302, %v97
    %v308 = vadd.f32 %v305, %v98
    %v309 = vsel %vm113, %v307, 0.0
    %310 = vadd.xlane.f32.xlu0 %v309
    %v311 = vpop.xlane.xlu0 %310
    %v312 = vsel %vm113, %v308, 0.0
    %313 = vadd.xlane.f32.xlu0 %v312
    %v314 = vpop.xlane.xlu0 %313
    %v315 = vrcp.pop 32.0
    %v316 = vmul.f32 32.0, %v315
    %v317 = vsub.f32 1.0, %v316
    %v318 = vmul.f32 %v315, %v317
    %v319 = vadd.f32 %v315, %v318
    %vm320 = vweird.f32 %v315
    %v321 = vsel %vm320, %v315, %v319
    %v322 = vmul.f32 %v311, %v321
    %v323 = vmul.f32 %v314, %v321
    %v324 = vsub.f32 %v307, %v322
    %v325 = vsub.f32 %v308, %v323
    %v326 = vmul.f32 %v324, %v324
    %v327 = vmul.f32 %v325, %v325
    %v328 = vsel %vm113, %v326, 0.0
    %329 = vadd.xlane.f32.xlu0 %v328
    %v330 = vpop.xlane.xlu0 %329
    %v331 = vsel %vm113, %v327, 0.0
    %332 = vadd.xlane.f32.xlu0 %v331
    %v333 = vpop.xlane.xlu0 %332
    %v334 = vmul.f32 %v330, %v321
    %v335 = vmul.f32 %v333, %v321
    %v336 = vadd.f32 %v334, 1e-05
    %v337 = vadd.f32 %v335, 1e-05
    %v338 = vrsqrt.pop %v336
    %v339 = vmul.f32 %v338, %v336
    %v340 = vmul.f32 %v339, %v338
    %v341 = vmul.f32 0.5, %v340
    %v342 = vsub.f32 1.5, %v341
    %v343 = vmul.f32 %v338, %v342
    %vm344 = vweird.f32 %v336
    %vm345 = vweird.f32 %v338
    %vm346 = vmor %vm344, %vm345
    %v347 = vsel %vm346, %v338, %v343
    %v348 = vrsqrt.pop %v337
    %v349 = vmul.f32 %v348, %v337
    %v350 = vmul.f32 %v349, %v348
    %v351 = vmul.f32 0.5, %v350
    %v352 = vsub.f32 1.5, %v351
    %v353 = vmul.f32 %v348, %v352
    %vm354 = vweird.f32 %v337
    %vm355 = vweird.f32 %v348
    %vm356 = vmor %vm354, %vm355
    %v357 = vsel %vm356, %v348, %v353
    %v358 = vmul.f32 %v324, %v347
    %v359 = vmul.f32 %v325, %v357
    %v360 = vperm.slane %v103, 0
    %v361 = vmul.f32 %v358, %v360
    %v362 = vmul.f32 %v359, %v360
    %v363 = vperm.slane %v104, 0
    %v364 = vadd.f32 %v361, %v363
    %v365 = vadd.f32 %v362, %v363
    %s366 = scalar_lea.vmem [#allocation7], 128
    %v367 = vld [vmem:[%s366] sm:$0xff]
    %v368 = vld [vmem:[%s366 + $0x8] sm:$0xff]
    %v369 = vld [vmem:[%s366 + $0x10] sm:$0xff]
    %v370 = vld [vmem:[%s366 + $0x18] sm:$0xff]
    %v371 = vperm.slane %v105, 0
    %v373 = vsel %vm113, %v364, 0
    %v376 = vsel %vm113, %v365, 0
    %378 = vmatpush.msra.mxu0 0.0
    %379 = vmatpush.msra.mxu0 0.0
    %380 = vmatpush.msra.mxu0 0.0
    %381 = vmatpush.msra.mxu0 0.0
    %382 = vmatpush.msra.mxu0 0.0
    %383 = vmatpush.msra.mxu0 0.0
    %384 = vmatpush.msra.mxu0 0.0
    %385 = vmatpush.msra.mxu0 0.0
    %386 = vmatpush.msra.mxu0 0.0
    %387 = vmatpush.msra.mxu0 0.0
    %388 = vmatpush.msra.mxu0 0.0
    %389 = vmatpush.msra.mxu0 0.0
    %390 = vmatpush.msra.mxu0 %v370
    %391 = vmatpush.msra.mxu0 %v369
    %392 = vmatpush.msra.mxu0 %v368
    %393 = vmatpush.msra.mxu0 %v367
    %394 = vmatmul.f32.gmra.mxu0 %v373
    %v395 = vpop.f32.mrf.mxu0
    %v396 = vadd.f32 %v371, %v395
    %397 = vmatmul.f32.gmra.mxu0 %v376
    %v398 = vpop.f32.mrf.mxu0
    %v399 = vadd.f32 %v371, %v398
    %400 = vdwg.mxu0
    %vm401 = vcmp.ge.f32.partialorder %v396, 0.0
    %vm402 = vcmp.ge.f32.partialorder %v399, 0.0
    %v403 = vperm.slane %v106, 0
    %v404 = vmul.f32 %v403, %v396
    %v405 = vmul.f32 %v403, %v399
    %v406 = vsel %vm401, %v396, %v404
    %v407 = vsel %vm402, %v399, %v405
    %v408 = vld [vmem:[#allocation8] sm:$0xff]
    %v409 = vld [vmem:[#allocation8 + $0x8] sm:$0xff]
    %v410 = vld [vmem:[#allocation8 + $0x10] sm:$0xff]
    %v411 = vld [vmem:[#allocation8 + $0x18] sm:$0xff]
    %v412 = vperm.slane %v107, 0
    %v414 = vsel %vm113, %v406, 0
    %v417 = vsel %vm113, %v407, 0
    %419 = vmatpush.msra.mxu0 0.0
    %420 = vmatpush.msra.mxu0 0.0
    %421 = vmatpush.msra.mxu0 0.0
    %422 = vmatpush.msra.mxu0 0.0
    %423 = vmatpush.msra.mxu0 0.0
    %424 = vmatpush.msra.mxu0 0.0
    %425 = vmatpush.msra.mxu0 0.0
    %426 = vmatpush.msra.mxu0 0.0
    %427 = vmatpush.msra.mxu0 0.0
    %428 = vmatpush.msra.mxu0 0.0
    %429 = vmatpush.msra.mxu0 0.0
    %430 = vmatpush.msra.mxu0 0.0
    %431 = vmatpush.msra.mxu0 %v411
    %432 = vmatpush.msra.mxu0 %v410
    %433 = vmatpush.msra.mxu0 %v409
    %434 = vmatpush.msra.mxu0 %v408
    %435 = vmatmul.f32.gmra.mxu0 %v414
    %v436 = vpop.f32.mrf.mxu0
    %v437 = vadd.f32 %v412, %v436
    %438 = vmatmul.f32.gmra.mxu0 %v417
    %v439 = vpop.f32.mrf.mxu0
    %v440 = vadd.f32 %v412, %v439
    %441 = vdwg.mxu0
    %442 = vst [vmem:[#allocation11] sm:$0xff] %v437
    %443 = vst [vmem:[#allocation11 + $0x8] sm:$0xff] %v440
    // Predicated region
    $region42: #{tpu_custom_call.1} parent=1 // pred_check
      _
    $region43: #{tpu_custom_call.1} parent=1 // pred_check_branch
      %445 = sbr.rel (0) target = $region45
    $region44: #{tpu_custom_call.1} parent=1 // pred_region
      %447 = vsyncadd [#allocation4], 0
      %s448 = sshll.u32 [#allocation11], 4
      %s449 = int_to_ptr.vmem [resolvable:$true] %s448
      %s450 = sshll.u32 %s5, 4
      %s451 = int_to_ptr.hbm [resolvable:$true] %s450
      %456 = dma.vmem_to_hbm [thread:$0]  %s449, 256, %s451, [#allocation4], 128, 128, 8
    $region45: #{tpu_custom_call.1} parent=1 // pred_fallthru
      _
    // Predicated region
    $region46: #{tpu_custom_call.1} parent=1 // pred_check
      _
    $region47: #{tpu_custom_call.1} parent=1 // pred_check_branch
      %458 = sbr.rel (0) target = $region49
    $region48: #{tpu_custom_call.1} parent=1 // pred_region
      %460 = dma.done [#allocation4], 256
    $region49: #{tpu_custom_call.1} parent=1 // pred_fallthru
      _
    %461 = vsyncpa [#allocation3], 1
    %462 = vsyncpa [#allocation6], 1
    %463 = vsyncpa [#allocation9], 1
    %464 = vsyncpa [#allocation4], 1

</llo_original>
